<compile_context>
chip_gen: v6e
topology: v6e:2x2x1
jax: 0.10.0
libtpu: 0.0.40
codegen_flags: <defaults>
</compile_context>

<pallas_src>
import functools
from typing import NamedTuple

import jax
import jax.numpy as jnp
from jax.experimental import pallas as pl
from jax.experimental.pallas import tpu as pltpu

_LANE = 128


# ---------------------------------------------------------------------------
# Kernels
# ---------------------------------------------------------------------------
def _mlp_kernel_acc(x_ref, w_ref, b_ref, o_ref, acc_ref):
    """General path: K split over the innermost grid axis, f32 accumulator."""
    k = pl.program_id(2)

    @pl.when(k == 0)
    def _init():
        acc_ref[...] = jnp.zeros_like(acc_ref)

    acc_ref[...] += jnp.dot(
        x_ref[...], w_ref[...], preferred_element_type=jnp.float32
    )

    @pl.when(k == pl.num_programs(2) - 1)
    def _epilogue():
        # Bias + ReLU + cast once per output tile, on the last K step only.
        y = acc_ref[...] + b_ref[...].astype(jnp.float32)
        o_ref[...] = jnp.maximum(y, 0.0).astype(o_ref.dtype)


def _mlp_kernel_single_k(x_ref, w_ref, b_ref, o_ref):
    """Single-K-step path: no accumulator round-trip, fully fused epilogue."""
    y = jnp.dot(x_ref[...], w_ref[...], preferred_element_type=jnp.float32)
    y = y + b_ref[...].astype(jnp.float32)
    o_ref[...] = jnp.maximum(y, 0.0).astype(o_ref.dtype)


# ---------------------------------------------------------------------------
# Tile planning (static, generation-aware)
# ---------------------------------------------------------------------------
class _Plan(NamedTuple):
    tm: int
    tn: int
    tk: int
    Kp: int
    Np: int
    single_k: bool
    vmem_limit: int


def _round_up(x, m):
    return ((x + m - 1) // m) * m


def _sublane_multiple(dtype):
    # Sub-32-bit dtypes pack along sublanes: 8 rows for f32, 16 bf16, 32 int8.
    return {4: 8, 2: 16, 1: 32}.get(jnp.dtype(dtype).itemsize, 8)


def _vmem_capacity_bytes():
    try:
        info = pltpu.get_tpu_info()
        cap = int(getattr(info, "vmem_capacity_bytes", 0) or 0)
        if cap > 0:
            return cap
    except Exception:
        pass
    return 64 * 1024 * 1024  # conservative per-core default (v7x)


def _dim_tile_candidates(dim):
    """Candidate tile sizes for a lane-mapped dim, largest first."""
    if dim <= _LANE:
        return [dim]  # full-dim block -> legal without padding
    full = _round_up(dim, _LANE)
    cands = [full] if full <= 4096 else []
    for c in (4096, 2048, 1024, 512, 256, 128):
        if c < full and c not in cands:
            cands.append(c)
    return cands


def _make_plan(M, K, N, compute_dtype):
    itemsize = jnp.dtype(compute_dtype).itemsize
    sub = _sublane_multiple(compute_dtype)
    cap = _vmem_capacity_bytes()

    # ~45% of per-core VMEM for this kernel's live buffers (double buffers + acc).
    tile_budget = max(int(0.45 * cap), 8 * 1024 * 1024)

    tm = min(_round_up(M, sub), 512)
    Mp = _round_up(M, tm)
    m_blocks = Mp // tm

    def vmem_need(tn, tk, k_steps):
        acc = tm * tn * 4 if k_steps > 1 else 0
        return (2 * (tm * tk + tk * tn + tn) * itemsize   # double-buffered inputs
                + 2 * tm * tn * itemsize                  # double-buffered output
                + acc)                                    # f32 accumulator scratch

    best = None
    for tk in _dim_tile_candidates(K):
        Kp = _round_up(K, tk)
        k_steps = Kp // tk
        for tn in _dim_tile_candidates(N):
            Np = _round_up(N, tn)
            if vmem_need(tn, tk, k_steps) > tile_budget:
                continue
            n_blocks = Np // tn
            # HBM bytes actually moved: x replayed per N block, W per M block.
            traffic = (n_blocks * Mp * Kp + m_blocks * Kp * Np + Mp * Np) * itemsize
            grid_steps = m_blocks * n_blocks * k_steps
            score = (traffic, grid_steps, k_steps, -tn, -tk)
            if best is None or score < best[0]:
                best = (score, tn, tk, Kp, Np)

    if best is None:  # pathological fallback: minimal legal tiles
        tk = K if K <= _LANE else _LANE
        tn = N if N <= _LANE else _LANE
        Kp, Np = _round_up(K, tk), _round_up(N, tn)
    else:
        _, tn, tk, Kp, Np = best

    # v7x shards the parallel grid axes across 2 TensorCores: avoid a 1x1
    # parallel grid when N is large enough to split into >= 2 blocks.
    if m_blocks * (Np // tn) == 1 and Np >= 2 * _LANE:
        for cand in _dim_tile_candidates(N):
            if cand < tn and _round_up(N, cand) // cand >= 2:
                tn, Np = cand, _round_up(N, cand)
                break

    k_steps = Kp // tk
    need = vmem_need(tn, tk, k_steps)
    scoped_default = 32 * 1024 * 1024
    hard_cap = (100 * 1024 * 1024 if cap >= 128 * 1024 * 1024
                else 48 * 1024 * 1024)
    vmem_limit = int(min(hard_cap, max(scoped_default, int(1.25 * need))))

    return _Plan(tm=tm, tn=tn, tk=tk, Kp=Kp, Np=Np,
                 single_k=(k_steps == 1), vmem_limit=vmem_limit)


# ---------------------------------------------------------------------------
# Wrapper
# ---------------------------------------------------------------------------
def prepare_params(weight, bias, batch_hint, x_dtype=jnp.float32,
                   compute_dtype=None):
    """One-time (model init): transpose + pad + optionally cast the PyTorch
    Linear parameters so no per-call weight padding/copying is required.

    weight: [out_features, in_features], bias: [out_features].
    """
    N, K = weight.shape
    compute_dtype = jnp.dtype(compute_dtype or x_dtype)
    plan = _make_plan(batch_hint, K, N, compute_dtype)

    w_t = weight.T.astype(compute_dtype)
    if (plan.Kp, plan.Np) != (K, N):
        w_t = jnp.pad(w_t, ((0, plan.Kp - K), (0, plan.Np - N)))
    b2 = bias.reshape(1, N).astype(jnp.float32)
    if plan.Np != N:
        b2 = jnp.pad(b2, ((0, 0), (0, plan.Np - N)))
    return jnp.asarray(w_t), jnp.asarray(b2), plan


@functools.partial(jax.jit, static_argnames=("plan", "n_out"))
def mlp_forward(x, w_t, b, plan, n_out):
    """x: [M, in_features]; w_t/b: pre-padded params from prepare_params."""
    M, K = x.shape
    tm, tn, tk = plan.tm, plan.tn, plan.tk
    Kp, Np = plan.Kp, plan.Np
    out_dtype = x.dtype

    if x.dtype != w_t.dtype:
        x = x.astype(w_t.dtype)  # optional bf16 compute path

    Mp = _round_up(M, tm)
    if (Mp, Kp) != (M, K):
        # Padding the activation is cheap relative to the weight stream; the
        # padded rows/cols are zeros and contribute nothing to the matmul.
        x = jnp.pad(x, ((0, Mp - M), (0, Kp - K)))

    m_blocks, n_blocks, k_steps = Mp // tm, Np // tn, Kp // tk

    cost = pl.CostEstimate(
        flops=2 * Mp * Kp * Np,
        transcendentals=0,
        bytes_accessed=(n_blocks * Mp * Kp * x.dtype.itemsize
                        + m_blocks * Kp * Np * w_t.dtype.itemsize
                        + Np * b.dtype.itemsize
                        + Mp * Np * jnp.dtype(out_dtype).itemsize),
    )
    compiler_params = pltpu.CompilerParams(
        dimension_semantics=(("parallel", "parallel") if plan.single_k
                             else ("parallel", "parallel", "arbitrary")),
        vmem_limit_bytes=plan.vmem_limit,
    )

    if plan.single_k:
        # Whole reduction fits one block: no accumulator, 2-D parallel grid.
        grid_spec = pltpu.PrefetchScalarGridSpec(
            num_scalar_prefetch=0,
            grid=(m_blocks, n_blocks),
            in_specs=[
                pl.BlockSpec((tm, tk), lambda i, j: (i, 0)),   # x tile
                pl.BlockSpec((tk, tn), lambda i, j: (0, j)),   # weight tile
                pl.BlockSpec((1, tn), lambda i, j: (0, j)),    # bias tile
            ],
            out_specs=pl.BlockSpec((tm, tn), lambda i, j: (i, j)),
        )
        kernel = _mlp_kernel_single_k
    else:
        grid_spec = pltpu.PrefetchScalarGridSpec(
            num_scalar_prefetch=0,
            grid=(m_blocks, n_blocks, k_steps),
            in_specs=[
                pl.BlockSpec((tm, tk), lambda i, j, k: (i, k)),   # x tile
                pl.BlockSpec((tk, tn), lambda i, j, k: (k, j)),   # weight tile
                pl.BlockSpec((1, tn), lambda i, j, k: (0, j)),    # bias tile
            ],
            out_specs=pl.BlockSpec((tm, tn), lambda i, j, k: (i, j)),
            scratch_shapes=[pltpu.VMEM((tm, tn), jnp.float32)],
        )
        kernel = _mlp_kernel_acc

    out_p = pl.pallas_call(
        kernel,
        out_shape=jax.ShapeDtypeStruct((Mp, Np), out_dtype),
        grid_spec=grid_spec,
        compiler_params=compiler_params,
        cost_estimate=cost,
    )(x, w_t, b)

    if (Mp, Np) != (M, n_out):
        out_p = out_p[:M, :n_out]
    return out_p


if __name__ == "__main__":
    # Small shapes consistent with the module: batch=8, in=32, out=64.
    batch, in_features, out_features = 8, 32, 64

    key = jax.random.PRNGKey(0)
    kx, kw, kb = jax.random.split(key, 3)

    x = jax.random.normal(kx, (batch, in_features), dtype=jnp.float32)
    # PyTorch Linear parameters: weight [out, in], bias [out].
    weight = jax.random.normal(kw, (out_features, in_features),
                               dtype=jnp.float32) * 0.1
    bias = jax.random.normal(kb, (out_features,), dtype=jnp.float32) * 0.1

    # One-time param prep (transpose + pad to the kernel's tile multiples).
    w_t, b2, plan = prepare_params(weight, bias, batch_hint=batch,
                                   x_dtype=x.dtype)

    out = mlp_forward(x, w_t, b2, plan, out_features)
    out = jax.block_until_ready(out)

    # Reference: x @ W^T + b followed by ReLU.
    ref = jnp.maximum(x @ weight.T + bias, 0.0)
    assert out.shape == ref.shape
    assert jnp.allclose(out, ref, atol=1e-5, rtol=1e-5), "mismatch vs reference"

    print("KERNEL_OK")
</pallas_src>

<mosaic_0001>
module attributes {stable_mosaic.version = 11 : i64} {
  func.func @_mlp_kernel_single_k(%arg0: i32, %arg1: i32, %arg2: memref<8x32xf32, #tpu.memory_space<vmem>>, %arg3: memref<32x64xf32, #tpu.memory_space<vmem>>, %arg4: memref<1x64xf32, #tpu.memory_space<vmem>>, %arg5: memref<8x64xf32, #tpu.memory_space<vmem>>) attributes {dimension_semantics = [#tpu.dimension_semantics<parallel>, #tpu.dimension_semantics<parallel>], iteration_bounds = array<i64: 1, 1>, scalar_prefetch = 0 : i64, scratch_operands = 0 : i64, tpu.core_type = #tpu.core_type<tc>, window_params = [{transform_indices = @transform_0, window_bounds = array<i64: 8, 32>}, {transform_indices = @transform_1, window_bounds = array<i64: 32, 64>}, {transform_indices = @transform_2, window_bounds = array<i64: 1, 64>}, {transform_indices = @transform_3, window_bounds = array<i64: 8, 64>}]} {
    %c0 = arith.constant 0 : index
    %c0_0 = arith.constant 0 : index
    %0 = vector.load %arg2[%c0, %c0_0] : memref<8x32xf32, #tpu.memory_space<vmem>>, vector<8x32xf32>
    %c0_1 = arith.constant 0 : index
    %c0_2 = arith.constant 0 : index
    %1 = vector.load %arg3[%c0_1, %c0_2] : memref<32x64xf32, #tpu.memory_space<vmem>>, vector<32x64xf32>
    %cst = arith.constant dense<0.000000e+00> : vector<8x64xf32>
    %2 = tpu.matmul %0, %1, %cst {dimension_numbers = #tpu.dot_dimension_numbers<[1], [0], [0], [1], [0, 0, 1, 1], [], []>} : vector<8x32xf32>, vector<32x64xf32>, vector<8x64xf32> -> vector<8x64xf32>
    %c0_3 = arith.constant 0 : index
    %c0_4 = arith.constant 0 : index
    %3 = vector.load %arg4[%c0_3, %c0_4] : memref<1x64xf32, #tpu.memory_space<vmem>>, vector<1x64xf32>
    %4 = vector.broadcast %3 : vector<1x64xf32> to vector<8x64xf32>
    %5 = arith.addf %2, %4 : vector<8x64xf32>
    %cst_5 = arith.constant 0.000000e+00 : f32
    %6 = vector.broadcast %cst_5 : f32 to vector<8x64xf32>
    %7 = arith.maximumf %5, %6 : vector<8x64xf32>
    %c0_6 = arith.constant 0 : index
    %c0_7 = arith.constant 0 : index
    %8 = vector.load %arg5[%c0_6, %c0_7] : memref<8x64xf32, #tpu.memory_space<vmem>>, vector<8x64xf32>
    tpu.vector_store %arg5[%c0_6, %c0_7], %7 {strides = array<i32>} : memref<8x64xf32, #tpu.memory_space<vmem>>, vector<8x64xf32>,
    return
  }
  func.func @transform_0(%arg0: i32, %arg1: i32) -> (i32, i32) {
    %c0_i32 = arith.constant 0 : i32
    %c0_i32_0 = arith.constant 0 : i32
    return %arg0, %c0_i32 : i32, i32
  }
  func.func @transform_1(%arg0: i32, %arg1: i32) -> (i32, i32) {
    %c0_i32 = arith.constant 0 : i32
    %c0_i32_0 = arith.constant 0 : i32
    return %c0_i32, %arg1 : i32, i32
  }
  func.func @transform_2(%arg0: i32, %arg1: i32) -> (i32, i32) {
    %c0_i32 = arith.constant 0 : i32
    %c0_i32_0 = arith.constant 0 : i32
    return %c0_i32, %arg1 : i32, i32
  }
  func.func @transform_3(%arg0: i32, %arg1: i32) -> (i32, i32) {
    %c0_i32 = arith.constant 0 : i32
    return %arg0, %arg1 : i32, i32
  }
}

</mosaic_0001>

<llo_original>
// kernel: mlp_forward.1
$region0: #{mlp_forward.1}
  #allocation0 [shape = 'u32[]', space=smem, size = 0x4, offset = 0x4, fixed_abs, tag = 'smem constant byte address 0x4 - core index']
  #allocation1 [shape = 'u32[144,128]{1,0:T(1,128)}', space=vmem, size = 0x12000, scoped, tag = 'internal scratch']
  %s0 = inlined_call_operand.hbm [shape: f32[8,32], index: 0, kind: input, shape index: {}]
  %s1 = inlined_call_operand.hbm [shape: f32[32,64], index: 1, kind: input, shape index: {}]
  %s2 = inlined_call_operand.vmem [shape: f32[1,64], index: 2, kind: input, shape index: {}]
  %s3 = inlined_call_operand.hbm [shape: f32[8,64], index: 3, kind: output, shape index: {}]
  %s4 = sld [smem:[#allocation0]]
  $region30: #{mlp_forward.1} parent=0
    _
  %s6 = ssub.s32 1, %s4
  %s7 = scalar_select 0, %s6, %s4
  $region1: #{mlp_forward.1} parent=0
    #allocation2 [shape = 'u8[4096]{0}', space=vmem, size = 0x1000, scoped, tag = 'input window, operand 0, single buffered']
    #allocation3 [shape = 's32[1]{0}', space=sflag, size = 0x4, scoped, tag = 'scoped memory for mlp_forward.1']
    #allocation4 [shape = 's32[1]{0}', space=sflag, size = 0x4, scoped, tag = 'scoped memory for mlp_forward.1']
    #allocation5 [shape = 'u8[16384]{0}', space=vmem, size = 0x4000, scoped, tag = 'input window, operand 1, single buffered']
    #allocation6 [shape = 's32[1]{0}', space=sflag, size = 0x4, scoped, tag = 'scoped memory for mlp_forward.1']
    #allocation7 [shape = 'u8[4096]{0}', space=vmem, size = 0x1000, scoped, tag = 'output window, operand 0, single buffered']
    %8 = vsyncpa [#allocation3], 0
    %9 = vsyncpa [#allocation6], 0
    %10 = vsyncpa [#allocation4], 0
    // Predicated region
    $region2: #{mlp_forward.1} parent=1 // pred_check
      _
    $region3: #{mlp_forward.1} parent=1 // pred_check_branch
      %12 = sbr.rel (0) target = $region5
    $region4: #{mlp_forward.1} parent=1 // pred_region
      %s14 = ssub.s32 128, 128
      %15 = vsyncadd [#allocation3], %s14
      %s17 = sshll.u32 [#allocation2], 4
      %s18 = int_to_ptr.vmem [resolvable:$true] %s17
      %20 = dma.hbm_to_vmem [thread:$0]  %s0, 128, %s18, [#allocation3]
    $region5: #{mlp_forward.1} parent=1 // pred_fallthru
      _
    // Predicated region
    $region6: #{mlp_forward.1} parent=1 // pred_check
      _
    $region7: #{mlp_forward.1} parent=1 // pred_check_branch
      %22 = sbr.rel (0) target = $region9
    $region8: #{mlp_forward.1} parent=1 // pred_region
      %s24 = ssub.s32 512, 512
      %25 = vsyncadd [#allocation6], %s24
      %s26 = sshll.u32 [#allocation5], 4
      %s27 = int_to_ptr.vmem [resolvable:$true] %s26
      %32 = dma.hbm_to_vmem [thread:$0]  %s1, 512, %s27, [#allocation6], 128, 128, 8
    $region9: #{mlp_forward.1} parent=1 // pred_fallthru
      _
    // Predicated region
    $region10: #{mlp_forward.1} parent=1 // pred_check
      _
    $region11: #{mlp_forward.1} parent=1 // pred_check_branch
      %34 = sbr.rel (0) target = $region13
    $region12: #{mlp_forward.1} parent=1 // pred_region
      _
    $region13: #{mlp_forward.1} parent=1 // pred_fallthru
      _
    // Predicated region
    $region14: #{mlp_forward.1} parent=1 // pred_check
      _
    $region15: #{mlp_forward.1} parent=1 // pred_check_branch
      %36 = sbr.rel (0) target = $region17
    $region16: #{mlp_forward.1} parent=1 // pred_region
      %37 = dma.done [#allocation3], 128
    $region17: #{mlp_forward.1} parent=1 // pred_fallthru
      _
    // Predicated region
    $region18: #{mlp_forward.1} parent=1 // pred_check
      _
    $region19: #{mlp_forward.1} parent=1 // pred_check_branch
      %39 = sbr.rel (0) target = $region21
    $region20: #{mlp_forward.1} parent=1 // pred_region
      %40 = dma.done [#allocation6], 512
    $region21: #{mlp_forward.1} parent=1 // pred_fallthru
      _
    %v41 = vld [vmem:[#allocation2] sm:$0xff]
    %v42 = vld [vmem:[#allocation5] sm:$0xff]
    %v43 = vld [vmem:[#allocation5 + $0x8] sm:$0xff]
    %v44 = vld [vmem:[#allocation5 + $0x10] sm:$0xff]
    %v45 = vld [vmem:[#allocation5 + $0x18] sm:$0xff]
    %v46 = vld [vmem:[%s2] sm:$0x1]
    %v48 = vlaneseq
    %v49 = vshrl.u32 %v48, 7
    %v50 = vsub.s32 0, %v49
    %v51 = vrot.slane %v46, %v50
    %vm53 = vcmask 261120
    %v55 = vsel %vm53, %v41, 0
    %57 = vmatprep.subr.mxu0 0.0
    %58 = vmatpush1.msra.mxu0 0.0
    %59 = vmatprep.subr.mxu0 0.0
    %60 = vmatpush1.msra.mxu0 0.0
    %61 = vmatprep.subr.mxu0 0.0
    %62 = vmatpush1.msra.mxu0 0.0
    %63 = vmatprep.subr.mxu0 0.0
    %64 = vmatpush1.msra.mxu0 0.0
    %65 = vmatprep.subr.mxu0 0.0
    %66 = vmatpush1.msra.mxu0 0.0
    %67 = vmatprep.subr.mxu0 0.0
    %68 = vmatpush1.msra.mxu0 0.0
    %69 = vmatprep.subr.mxu0 0.0
    %70 = vmatpush1.msra.mxu0 0.0
    %71 = vmatprep.subr.mxu0 0.0
    %72 = vmatpush1.msra.mxu0 0.0
    %73 = vmatprep.subr.mxu0 0.0
    %74 = vmatpush1.msra.mxu0 0.0
    %75 = vmatprep.subr.mxu0 0.0
    %76 = vmatpush1.msra.mxu0 0.0
    %77 = vmatprep.subr.mxu0 0.0
    %78 = vmatpush1.msra.mxu0 0.0
    %79 = vmatprep.subr.mxu0 0.0
    %80 = vmatpush1.msra.mxu0 0.0
    %81 = vmatprep.subr.mxu0 0.0
    %82 = vmatpush1.msra.mxu0 %v45
    %83 = vmatprep.subr.mxu0 0.0
    %84 = vmatpush1.msra.mxu0 %v44
    %85 = vmatprep.subr.mxu0 0.0
    %86 = vmatpush1.msra.mxu0 %v43
    %87 = vmatprep.subr.mxu0 0.0
    %88 = vmatpush1.msra.mxu0 %v42
    %89 = vmatprep.subr.mxu0 0.0
    %90 = vmatpush2.msra.mxu0 0.0
    %91 = vmatprep.subr.mxu0 0.0
    %92 = vmatpush2.msra.mxu0 0.0
    %93 = vmatprep.subr.mxu0 0.0
    %94 = vmatpush2.msra.mxu0 0.0
    %95 = vmatprep.subr.mxu0 0.0
    %96 = vmatpush2.msra.mxu0 0.0
    %97 = vmatprep.subr.mxu0 0.0
    %98 = vmatpush2.msra.mxu0 0.0
    %99 = vmatprep.subr.mxu0 0.0
    %100 = vmatpush2.msra.mxu0 0.0
    %101 = vmatprep.subr.mxu0 0.0
    %102 = vmatpush2.msra.mxu0 0.0
    %103 = vmatprep.subr.mxu0 0.0
    %104 = vmatpush2.msra.mxu0 0.0
    %105 = vmatprep.subr.mxu0 0.0
    %106 = vmatpush2.msra.mxu0 0.0
    %107 = vmatprep.subr.mxu0 0.0
    %108 = vmatpush2.msra.mxu0 0.0
    %109 = vmatprep.subr.mxu0 0.0
    %110 = vmatpush2.msra.mxu0 0.0
    %111 = vmatprep.subr.mxu0 0.0
    %112 = vmatpush2.msra.mxu0 0.0
    %113 = vmatprep.subr.mxu0 0.0
    %114 = vmatpush2.msra.mxu0 0.0
    %115 = vmatprep.subr.mxu0 0.0
    %116 = vmatpush2.msra.mxu0 0.0
    %117 = vmatprep.subr.mxu0 0.0
    %118 = vmatpush2.msra.mxu0 0.0
    %119 = vmatprep.subr.mxu0 0.0
    %120 = vmatpush2.msra.mxu0 0.0
    %121 = vmatprep.mubr.f32.mxu0 0.0
    %122 = vmatmul.mubr.f32.gmra.mxu0 %v55
    %v123 = vpop.f32.mrf.mxu0
    %v124 = vadd.f32 %v51, %v123
    %v125 = vpop.f32.mrf.mxu0
    %126 = vdwg.mxu0
    %v127 = vmax.f32 %v124, 0.0
    %vm128 = vcmask 523264
    %129 = vst.msk [vmem:[#allocation7] sm:$0xff] %vm128, %v127
    // Predicated region
    $region22: #{mlp_forward.1} parent=1 // pred_check
      _
    $region23: #{mlp_forward.1} parent=1 // pred_check_branch
      %131 = sbr.rel (0) target = $region25
    $region24: #{mlp_forward.1} parent=1 // pred_region
      %s133 = ssub.s32 128, 128
      %134 = vsyncadd [#allocation4], %s133
      %s136 = sshll.u32 [#allocation7], 4
      %s137 = int_to_ptr.vmem [resolvable:$true] %s136
      %139 = dma.vmem_to_hbm [thread:$0]  %s137, 128, %s3, [#allocation4]
    $region25: #{mlp_forward.1} parent=1 // pred_fallthru
      _
    // Predicated region
    $region26: #{mlp_forward.1} parent=1 // pred_check
      _
    $region27: #{mlp_forward.1} parent=1 // pred_check_branch
      %141 = sbr.rel (0) target = $region29
    $region28: #{mlp_forward.1} parent=1 // pred_region
      %142 = dma.done [#allocation4], 128
    $region29: #{mlp_forward.1} parent=1 // pred_fallthru
      _
    %143 = vsyncpa [#allocation3], 1
    %144 = vsyncpa [#allocation6], 1
    %145 = vsyncpa [#allocation4], 1

</llo_original>
